<compile_context>
chip_gen: v7x
topology: tpu7x:2x2x1
jax: 0.10.0
libtpu: 0.0.40
codegen_flags: <defaults>
</compile_context>

<pallas_src>
import functools

import jax
import jax.numpy as jnp
from jax.experimental import pallas as pl
from jax.experimental.pallas import tpu as pltpu


_VMEM_BUDGET_BYTES = 20 * 1024 * 1024   # conservative tile budget (v7x-safe)
_VMEM_LIMIT_BYTES = 32 * 1024 * 1024    # scoped limit (<= default on v6e/v7x)


def _round_up(n: int, m: int) -> int:
    return ((n + m - 1) // m) * m


def _default_block_b() -> int:
    """Generation-dependent default batch tile (amortize per-step overhead)."""
    try:
        kind = jax.devices()[0].device_kind.lower()
    except Exception:
        return 4096
    if "v7" in kind:
        return 8192
    if "v5e" in kind or "v5 lite" in kind or "v5lite" in kind:
        return 2048
    return 4096


def _recommended_compute_dtype():
    """bf16 MXU feed on v5e (f32 operands take the slow multi-pass MXU path)."""
    try:
        kind = jax.devices()[0].device_kind.lower()
        if "v5e" in kind or "v5 lite" in kind or "v5lite" in kind:
            return jnp.bfloat16
    except Exception:
        pass
    return jnp.float32


def _vmem_estimate_bytes(tb, obs, hid, act, cdt_size, out_size):
    # Resident weights/biases (constant index_map).
    weights = obs * hid * cdt_size + hid * act * cdt_size + (hid + act) * 4
    # x / out streams are double-buffered by the BlockSpec pipeline.
    streams = 2 * tb * obs * cdt_size + 2 * tb * act * out_size
    # f32 intermediates (h after relu, o before store).
    scratch = tb * hid * 4 + tb * act * 4
    return weights + streams + scratch


def pgnet_kernel(x_ref, w1_ref, b1_ref, w2_ref, b2_ref, out_ref):
    # fc1: (TB, obs) @ (obs, hid) on the MXU with f32 accumulation.
    # x is cast to the weight dtype in-kernel (no-op for f32, bf16 MXU feed
    # otherwise) so no extra wrapper pass over x is needed.
    x = x_ref[...].astype(w1_ref.dtype)
    h = jnp.dot(x, w1_ref[...], preferred_element_type=jnp.float32)
    # Bias + relu in f32 on the VPU (biases stored f32).
    h = jnp.maximum(h + b1_ref[...], 0.0)
    # output: (TB, hid) @ (hid, act), f32 accumulation.
    o = jnp.dot(h.astype(w2_ref.dtype), w2_ref[...],
                preferred_element_type=jnp.float32)
    # Unpadded (TB, act) store; downcast only here.
    out_ref[...] = (o + b2_ref[...]).astype(out_ref.dtype)


def prepare_pgnet_params(w1, b1, w2, b2, *, compute_dtype=None):
    """One-time parameter preparation (hoisted out of the per-call path).

    w1: (obs_size, hid_size)   (pre-transposed vs. torch's (out, in))
    b1: (1, hid_size) or (hid_size,)
    w2: (hid_size, act_size)
    b2: (1, act_size) or (act_size,)
    """
    cdt = compute_dtype if compute_dtype is not None else _recommended_compute_dtype()
    hid = w1.shape[1]
    act = w2.shape[1]
    return (w1.astype(cdt),
            jnp.asarray(b1, jnp.float32).reshape(1, hid),
            w2.astype(cdt),
            jnp.asarray(b2, jnp.float32).reshape(1, act))


def pgnet_apply(params, x, *, block_b=None):
    """Forward pass: out = relu(x @ w1 + b1) @ w2 + b2.   x: (B, obs_size)."""
    w1, b1, w2, b2 = params
    B, obs = x.shape
    hid = w1.shape[1]
    act = w2.shape[1]
    out_dtype = x.dtype
    cdt_size = jnp.dtype(w1.dtype).itemsize
    out_size = jnp.dtype(out_dtype).itemsize

    if block_b is None:
        block_b = _default_block_b()

    # Batch tile: multiple of 8 (sublane), no larger than the (rounded) batch.
    n_rows = _round_up(B, 8)
    tb = min(_round_up(block_b, 8), n_rows)
    # Keep at least 2 grid steps when the batch is large (v7x dual TensorCore).
    if n_rows >= 1024:
        tb = min(tb, _round_up(pl.cdiv(n_rows, 2), 8))
    # VMEM budget (matters on v7x's 64 MiB part / large hid): shrink the tile.
    while tb > 8 and _vmem_estimate_bytes(tb, obs, hid, act,
                                          cdt_size, out_size) > _VMEM_BUDGET_BYTES:
        tb = max(8, _round_up(tb // 2, 8))

    grid = (pl.cdiv(B, tb),)
    return pl.pallas_call(
        pgnet_kernel,
        out_shape=jax.ShapeDtypeStruct((B, act), out_dtype),
        grid=grid,
        in_specs=[
            # Batch-streamed activations (double-buffered by the pipeline).
            pl.BlockSpec((tb, obs), lambda i: (i, 0)),
            # Weights / biases: constant index_map -> VMEM-resident, no re-DMA.
            pl.BlockSpec((obs, hid), lambda i: (0, 0)),
            pl.BlockSpec((1, hid), lambda i: (0, 0)),
            pl.BlockSpec((hid, act), lambda i: (0, 0)),
            pl.BlockSpec((1, act), lambda i: (0, 0)),
        ],
        out_specs=pl.BlockSpec((tb, act), lambda i: (i, 0)),
        compiler_params=pltpu.CompilerParams(
            dimension_semantics=("parallel",),
            vmem_limit_bytes=_VMEM_LIMIT_BYTES,
        ),
    )(x, w1, b1, w2, b2)


def pgnet_forward(x, w1, b1, w2, b2, *, block_b=None, compute_dtype=None):
    """Convenience wrapper matching the original signature."""
    params = prepare_pgnet_params(w1, b1, w2, b2, compute_dtype=compute_dtype)
    return pgnet_apply(params, x, block_b=block_b)


def init_pgnet_params(key, obs_size, act_size, hid_size=128, dtype=jnp.float32):
    """nn.Linear-style init U(-1/sqrt(fan_in), 1/sqrt(fan_in)); weights stored (in, out)."""
    k1, k2, k3, k4 = jax.random.split(key, 4)
    lim1 = 1.0 / jnp.sqrt(obs_size)
    lim2 = 1.0 / jnp.sqrt(hid_size)
    w1 = jax.random.uniform(k1, (obs_size, hid_size), dtype, -lim1, lim1)
    b1 = jax.random.uniform(k2, (1, hid_size), dtype, -lim1, lim1)
    w2 = jax.random.uniform(k3, (hid_size, act_size), dtype, -lim2, lim2)
    b2 = jax.random.uniform(k4, (1, act_size), dtype, -lim2, lim2)
    return w1, b1, w2, b2


if __name__ == "__main__":
    key = jax.random.PRNGKey(0)
    kx, kx2, kp = jax.random.split(key, 3)

    # Small logical shapes matching the module (CartPole-like policy net).
    batch, obs_size, act_size, hid_size = 2, 4, 2, 32
    x = jax.random.normal(kx, (batch, obs_size), jnp.float32)
    w1, b1, w2, b2 = init_pgnet_params(kp, obs_size, act_size, hid_size)
    ref = jnp.maximum(x @ w1 + b1, 0.0) @ w2 + b2

    # f32 compute path (exact).
    params_f32 = prepare_pgnet_params(w1, b1, w2, b2, compute_dtype=jnp.float32)
    fwd = jax.jit(functools.partial(pgnet_apply, block_b=4096))
    out = jax.block_until_ready(fwd(params_f32, x))
    assert out.shape == (batch, act_size)
    assert jnp.allclose(out, ref, atol=1e-5, rtol=1e-5)

    # Ragged multi-step grid (partial last batch tile) — still exact.
    B2 = 1000
    x2 = jax.random.normal(kx2, (B2, obs_size), jnp.float32)
    out2 = jax.block_until_ready(
        jax.jit(functools.partial(pgnet_apply, block_b=256))(params_f32, x2))
    ref2 = jnp.maximum(x2 @ w1 + b1, 0.0) @ w2 + b2
    assert out2.shape == (B2, act_size)
    assert jnp.allclose(out2, ref2, atol=1e-5, rtol=1e-5)

    # bf16 MXU-feed path (f32 accumulation) — loose tolerance.
    params_bf16 = prepare_pgnet_params(w1, b1, w2, b2, compute_dtype=jnp.bfloat16)
    out_bf16 = jax.block_until_ready(
        jax.jit(functools.partial(pgnet_apply, block_b=4096))(params_bf16, x))
    assert out_bf16.shape == (batch, act_size)
    assert bool(jnp.all(jnp.isfinite(out_bf16)))
    assert jnp.allclose(out_bf16, ref, atol=1e-1, rtol=1e-1)

    print("KERNEL_OK")
</pallas_src>

<mosaic_0001>
module attributes {stable_mosaic.version = 11 : i64} {
  func.func @pgnet_kernel(%arg0: i32, %arg1: memref<8x4xf32, #tpu.memory_space<vmem>>, %arg2: memref<4x32xf32, #tpu.memory_space<vmem>>, %arg3: memref<1x32xf32, #tpu.memory_space<vmem>>, %arg4: memref<32x2xf32, #tpu.memory_space<vmem>>, %arg5: memref<1x2xf32, #tpu.memory_space<vmem>>, %arg6: memref<8x2xf32, #tpu.memory_space<vmem>>) attributes {dimension_semantics = [#tpu.dimension_semantics<parallel>], iteration_bounds = array<i64: 1>, scalar_prefetch = 0 : i64, scratch_operands = 0 : i64, tpu.core_type = #tpu.core_type<tc>, window_params = [{transform_indices = @transform_0, window_bounds = array<i64: 8, 4>}, {pipeline_mode = #tpu.pipeline_mode<synchronous>, transform_indices = @transform_1, window_bounds = array<i64: 4, 32>}, {pipeline_mode = #tpu.pipeline_mode<synchronous>, transform_indices = @transform_2, window_bounds = array<i64: 1, 32>}, {pipeline_mode = #tpu.pipeline_mode<synchronous>, transform_indices = @transform_3, window_bounds = array<i64: 32, 2>}, {pipeline_mode = #tpu.pipeline_mode<synchronous>, transform_indices = @transform_4, window_bounds = array<i64: 1, 2>}, {transform_indices = @transform_5, window_bounds = array<i64: 8, 2>}]} {
    %c0 = arith.constant 0 : index
    %c0_0 = arith.constant 0 : index
    %0 = vector.load %arg1[%c0, %c0_0] : memref<8x4xf32, #tpu.memory_space<vmem>>, vector<8x4xf32>
    %c0_1 = arith.constant 0 : index
    %c0_2 = arith.constant 0 : index
    %1 = vector.load %arg2[%c0_1, %c0_2] : memref<4x32xf32, #tpu.memory_space<vmem>>, vector<4x32xf32>
    %cst = arith.constant dense<0.000000e+00> : vector<8x32xf32>
    %2 = tpu.matmul %0, %1, %cst {dimension_numbers = #tpu.dot_dimension_numbers<[1], [0], [0], [1], [0, 0, 1, 1], [], []>} : vector<8x4xf32>, vector<4x32xf32>, vector<8x32xf32> -> vector<8x32xf32>
    %c0_3 = arith.constant 0 : index
    %c0_4 = arith.constant 0 : index
    %3 = vector.load %arg3[%c0_3, %c0_4] : memref<1x32xf32, #tpu.memory_space<vmem>>, vector<1x32xf32>
    %4 = vector.broadcast %3 : vector<1x32xf32> to vector<8x32xf32>
    %5 = arith.addf %2, %4 : vector<8x32xf32>
    %cst_5 = arith.constant 0.000000e+00 : f32
    %6 = vector.broadcast %cst_5 : f32 to vector<8x32xf32>
    %7 = arith.maximumf %5, %6 : vector<8x32xf32>
    %c0_6 = arith.constant 0 : index
    %c0_7 = arith.constant 0 : index
    %8 = vector.load %arg4[%c0_6, %c0_7] : memref<32x2xf32, #tpu.memory_space<vmem>>, vector<32x2xf32>
    %cst_8 = arith.constant dense<0.000000e+00> : vector<8x2xf32>
    %9 = tpu.matmul %7, %8, %cst_8 {dimension_numbers = #tpu.dot_dimension_numbers<[1], [0], [0], [1], [0, 0, 1, 1], [], []>} : vector<8x32xf32>, vector<32x2xf32>, vector<8x2xf32> -> vector<8x2xf32>
    %c0_9 = arith.constant 0 : index
    %c0_10 = arith.constant 0 : index
    %10 = vector.load %arg5[%c0_9, %c0_10] : memref<1x2xf32, #tpu.memory_space<vmem>>, vector<1x2xf32>
    %11 = vector.broadcast %10 : vector<1x2xf32> to vector<8x2xf32>
    %12 = arith.addf %9, %11 : vector<8x2xf32>
    %c0_11 = arith.constant 0 : index
    %c0_12 = arith.constant 0 : index
    %13 = vector.load %arg6[%c0_11, %c0_12] : memref<8x2xf32, #tpu.memory_space<vmem>>, vector<8x2xf32>
    tpu.vector_store %arg6[%c0_11, %c0_12], %12 {strides = array<i32>} : memref<8x2xf32, #tpu.memory_space<vmem>>, vector<8x2xf32>,
    return
  }
  func.func @transform_0(%arg0: i32) -> (i32, i32) {
    %c0_i32 = arith.constant 0 : i32
    %c0_i32_0 = arith.constant 0 : i32
    return %arg0, %c0_i32 : i32, i32
  }
  func.func @transform_1(%arg0: i32) -> (i32, i32) {
    %c0_i32 = arith.constant 0 : i32
    %c0_i32_0 = arith.constant 0 : i32
    %c0_i32_1 = arith.constant 0 : i32
    return %c0_i32, %c0_i32_0 : i32, i32
  }
  func.func @transform_2(%arg0: i32) -> (i32, i32) {
    %c0_i32 = arith.constant 0 : i32
    %c0_i32_0 = arith.constant 0 : i32
    %c0_i32_1 = arith.constant 0 : i32
    return %c0_i32, %c0_i32_0 : i32, i32
  }
  func.func @transform_3(%arg0: i32) -> (i32, i32) {
    %c0_i32 = arith.constant 0 : i32
    %c0_i32_0 = arith.constant 0 : i32
    %c0_i32_1 = arith.constant 0 : i32
    return %c0_i32, %c0_i32_0 : i32, i32
  }
  func.func @transform_4(%arg0: i32) -> (i32, i32) {
    %c0_i32 = arith.constant 0 : i32
    %c0_i32_0 = arith.constant 0 : i32
    %c0_i32_1 = arith.constant 0 : i32
    return %c0_i32, %c0_i32_0 : i32, i32
  }
  func.func @transform_5(%arg0: i32) -> (i32, i32) {
    %c0_i32 = arith.constant 0 : i32
    %c0_i32_0 = arith.constant 0 : i32
    return %arg0, %c0_i32 : i32, i32
  }
}

</mosaic_0001>

<llo_original>
// kernel: pgnet_apply.1
$region0: #{pgnet_apply.1}
  #allocation0 [shape = 'u32[]', space=smem, size = 0x4, offset = 0x4, fixed_abs, tag = 'smem constant byte address 0x4 - core index']
  #allocation1 [shape = 'u32[144,128]{1,0:T(1,128)}', space=vmem, size = 0x12000, scoped, tag = 'internal scratch']
  %s0 = inlined_call_operand.vmem [shape: f32[2,4], index: 0, kind: input, shape index: {}]
  %s1 = inlined_call_operand.vmem [shape: f32[4,32], index: 1, kind: input, shape index: {}]
  %s2 = inlined_call_operand.vmem [shape: f32[1,32], index: 2, kind: input, shape index: {}]
  %s3 = inlined_call_operand.vmem [shape: f32[32,2], index: 3, kind: input, shape index: {}]
  %s4 = inlined_call_operand.vmem [shape: f32[1,2], index: 4, kind: input, shape index: {}]
  %s5 = inlined_call_operand.hbm [shape: f32[2,2], index: 5, kind: output, shape index: {}]
  %s6 = sld [smem:[#allocation0]]
  $region30: #{pgnet_apply.1} parent=0
    _
  %s8 = ssub.s32 1, %s6
  %s9 = scalar_select 0, %s8, %s6
  $region1: #{pgnet_apply.1} parent=0
    #allocation2 [shape = 'u8[4096]{0}', space=vmem, size = 0x1000, scoped, tag = 'output window, operand 0, single buffered']
    #allocation3 [shape = 's32[1]{0}', space=sflag, size = 0x4, scoped, tag = 'scoped memory for pgnet_apply.1']
    %10 = vsyncpa [#allocation3], 0
    // Predicated region
    $region2: #{pgnet_apply.1} parent=1 // pred_check
      _
    $region3: #{pgnet_apply.1} parent=1 // pred_check_branch
      %12 = sbr.rel (0) target = $region5
    $region4: #{pgnet_apply.1} parent=1 // pred_region
      _
    $region5: #{pgnet_apply.1} parent=1 // pred_fallthru
      _
    // Predicated region
    $region6: #{pgnet_apply.1} parent=1 // pred_check
      _
    $region7: #{pgnet_apply.1} parent=1 // pred_check_branch
      %14 = sbr.rel (0) target = $region9
    $region8: #{pgnet_apply.1} parent=1 // pred_region
      _
    $region9: #{pgnet_apply.1} parent=1 // pred_fallthru
      _
    // Predicated region
    $region10: #{pgnet_apply.1} parent=1 // pred_check
      _
    $region11: #{pgnet_apply.1} parent=1 // pred_check_branch
      %16 = sbr.rel (0) target = $region13
    $region12: #{pgnet_apply.1} parent=1 // pred_region
      _
    $region13: #{pgnet_apply.1} parent=1 // pred_fallthru
      _
    // Predicated region
    $region14: #{pgnet_apply.1} parent=1 // pred_check
      _
    $region15: #{pgnet_apply.1} parent=1 // pred_check_branch
      %18 = sbr.rel (0) target = $region17
    $region16: #{pgnet_apply.1} parent=1 // pred_region
      _
    $region17: #{pgnet_apply.1} parent=1 // pred_fallthru
      _
    // Predicated region
    $region18: #{pgnet_apply.1} parent=1 // pred_check
      _
    $region19: #{pgnet_apply.1} parent=1 // pred_check_branch
      %20 = sbr.rel (0) target = $region21
    $region20: #{pgnet_apply.1} parent=1 // pred_region
      _
    $region21: #{pgnet_apply.1} parent=1 // pred_fallthru
      _
    %v21 = vld [vmem:[%s0] sm:$0xff]
    %v22 = vld [vmem:[%s1] sm:$0xf]
    %v23 = vld [vmem:[%s2] sm:$0x1]
    %v25 = vlaneseq
    %v26 = vshrl.u32 %v25, 7
    %v27 = vsub.s32 0, %v26
    %v28 = vrot.slane %v23, %v27
    %vm30 = vcmask 31744
    %v32 = vsel %vm30, %v21, 0
    %vm34 = vcmask 1043456
    %v36 = vsel %vm34, %v22, 0
    %38 = vmatprep.subr.mxu0 0.0
    %39 = vmatpush1.msra.mxu0 %v36
    %40 = vmatprep.subr.mxu0 0.0
    %41 = vmatpush1.msra.mxu0 0.0
    %42 = vmatprep.subr.mxu0 0.0
    %43 = vmatpush1.msra.mxu0 0.0
    %44 = vmatprep.subr.mxu0 0.0
    %45 = vmatpush1.msra.mxu0 0.0
    %46 = vmatprep.subr.mxu0 0.0
    %47 = vmatpush1.msra.mxu0 0.0
    %48 = vmatprep.subr.mxu0 0.0
    %49 = vmatpush1.msra.mxu0 0.0
    %50 = vmatprep.subr.mxu0 0.0
    %51 = vmatpush1.msra.mxu0 0.0
    %52 = vmatprep.subr.mxu0 0.0
    %53 = vmatpush1.msra.mxu0 0.0
    %54 = vmatprep.subr.mxu0 0.0
    %55 = vmatpush1.msra.mxu0 0.0
    %56 = vmatprep.subr.mxu0 0.0
    %57 = vmatpush1.msra.mxu0 0.0
    %58 = vmatprep.subr.mxu0 0.0
    %59 = vmatpush1.msra.mxu0 0.0
    %60 = vmatprep.subr.mxu0 0.0
    %61 = vmatpush1.msra.mxu0 0.0
    %62 = vmatprep.subr.mxu0 0.0
    %63 = vmatpush1.msra.mxu0 0.0
    %64 = vmatprep.subr.mxu0 0.0
    %65 = vmatpush1.msra.mxu0 0.0
    %66 = vmatprep.subr.mxu0 0.0
    %67 = vmatpush1.msra.mxu0 0.0
    %68 = vmatprep.subr.mxu0 0.0
    %69 = vmatpush1.msra.mxu0 0.0
    %70 = vmatprep.subr.mxu0 0.0
    %71 = vmatpush1.msra.mxu0 0.0
    %72 = vmatprep.subr.mxu0 0.0
    %73 = vmatpush1.msra.mxu0 0.0
    %74 = vmatprep.subr.mxu0 0.0
    %75 = vmatpush1.msra.mxu0 0.0
    %76 = vmatprep.subr.mxu0 0.0
    %77 = vmatpush1.msra.mxu0 0.0
    %78 = vmatprep.subr.mxu0 0.0
    %79 = vmatpush1.msra.mxu0 0.0
    %80 = vmatprep.subr.mxu0 0.0
    %81 = vmatpush1.msra.mxu0 0.0
    %82 = vmatprep.subr.mxu0 0.0
    %83 = vmatpush1.msra.mxu0 0.0
    %84 = vmatprep.subr.mxu0 0.0
    %85 = vmatpush1.msra.mxu0 0.0
    %86 = vmatprep.subr.mxu0 0.0
    %87 = vmatpush1.msra.mxu0 0.0
    %88 = vmatprep.subr.mxu0 0.0
    %89 = vmatpush1.msra.mxu0 0.0
    %90 = vmatprep.subr.mxu0 0.0
    %91 = vmatpush1.msra.mxu0 0.0
    %92 = vmatprep.subr.mxu0 0.0
    %93 = vmatpush1.msra.mxu0 0.0
    %94 = vmatprep.subr.mxu0 0.0
    %95 = vmatpush1.msra.mxu0 0.0
    %96 = vmatprep.subr.mxu0 0.0
    %97 = vmatpush1.msra.mxu0 0.0
    %98 = vmatprep.subr.mxu0 0.0
    %99 = vmatpush1.msra.mxu0 0.0
    %100 = vmatprep.subr.mxu0 0.0
    %101 = vmatpush1.msra.mxu0 0.0
    %102 = vmatprep.mubr.f32.mxu0 0.0
    %103 = vmatmul.mubr.f32.gmra.mrb[0].mxu0 %v32
    %v104 = vpop.f32.mrb[0].mxu0
    %v105 = vadd.f32 %v28, %v104
    %v106 = vpop.f32.mrb[0].mxu0
    %107 = vdwg.mxu0
    %v108 = vmax.f32 %v105, 0.0
    %v109 = vld [vmem:[%s3] sm:$0xff]
    %v110 = vld [vmem:[%s3 + $0x8] sm:$0xff]
    %v111 = vld [vmem:[%s3 + $0x10] sm:$0xff]
    %v112 = vld [vmem:[%s3 + $0x18] sm:$0xff]
    %v113 = vld [vmem:[%s4] sm:$0x1]
    %v115 = vlaneseq
    %v116 = vshrl.u32 %v115, 7
    %v117 = vsub.s32 0, %v116
    %v118 = vrot.slane %v113, %v117
    %vm120 = vcmask 261120
    %v122 = vsel %vm120, %v108, 0
    %124 = vmatprep.subr.mxu0 0.0
    %125 = vmatpush1.msra.mxu0 %v109
    %126 = vmatprep.subr.mxu0 0.0
    %127 = vmatpush1.msra.mxu0 %v110
    %128 = vmatprep.subr.mxu0 0.0
    %129 = vmatpush1.msra.mxu0 %v111
    %130 = vmatprep.subr.mxu0 0.0
    %131 = vmatpush1.msra.mxu0 %v112
    %132 = vmatprep.subr.mxu0 0.0
    %133 = vmatpush1.msra.mxu0 0.0
    %134 = vmatprep.subr.mxu0 0.0
    %135 = vmatpush1.msra.mxu0 0.0
    %136 = vmatprep.subr.mxu0 0.0
    %137 = vmatpush1.msra.mxu0 0.0
    %138 = vmatprep.subr.mxu0 0.0
    %139 = vmatpush1.msra.mxu0 0.0
    %140 = vmatprep.subr.mxu0 0.0
    %141 = vmatpush1.msra.mxu0 0.0
    %142 = vmatprep.subr.mxu0 0.0
    %143 = vmatpush1.msra.mxu0 0.0
    %144 = vmatprep.subr.mxu0 0.0
    %145 = vmatpush1.msra.mxu0 0.0
    %146 = vmatprep.subr.mxu0 0.0
    %147 = vmatpush1.msra.mxu0 0.0
    %148 = vmatprep.subr.mxu0 0.0
    %149 = vmatpush1.msra.mxu0 0.0
    %150 = vmatprep.subr.mxu0 0.0
    %151 = vmatpush1.msra.mxu0 0.0
    %152 = vmatprep.subr.mxu0 0.0
    %153 = vmatpush1.msra.mxu0 0.0
    %154 = vmatprep.subr.mxu0 0.0
    %155 = vmatpush1.msra.mxu0 0.0
    %156 = vmatprep.subr.mxu0 0.0
    %157 = vmatpush1.msra.mxu0 0.0
    %158 = vmatprep.subr.mxu0 0.0
    %159 = vmatpush1.msra.mxu0 0.0
    %160 = vmatprep.subr.mxu0 0.0
    %161 = vmatpush1.msra.mxu0 0.0
    %162 = vmatprep.subr.mxu0 0.0
    %163 = vmatpush1.msra.mxu0 0.0
    %164 = vmatprep.subr.mxu0 0.0
    %165 = vmatpush1.msra.mxu0 0.0
    %166 = vmatprep.subr.mxu0 0.0
    %167 = vmatpush1.msra.mxu0 0.0
    %168 = vmatprep.subr.mxu0 0.0
    %169 = vmatpush1.msra.mxu0 0.0
    %170 = vmatprep.subr.mxu0 0.0
    %171 = vmatpush1.msra.mxu0 0.0
    %172 = vmatprep.subr.mxu0 0.0
    %173 = vmatpush1.msra.mxu0 0.0
    %174 = vmatprep.subr.mxu0 0.0
    %175 = vmatpush1.msra.mxu0 0.0
    %176 = vmatprep.subr.mxu0 0.0
    %177 = vmatpush1.msra.mxu0 0.0
    %178 = vmatprep.subr.mxu0 0.0
    %179 = vmatpush1.msra.mxu0 0.0
    %180 = vmatprep.subr.mxu0 0.0
    %181 = vmatpush1.msra.mxu0 0.0
    %182 = vmatprep.subr.mxu0 0.0
    %183 = vmatpush1.msra.mxu0 0.0
    %184 = vmatprep.subr.mxu0 0.0
    %185 = vmatpush1.msra.mxu0 0.0
    %186 = vmatprep.subr.mxu0 0.0
    %187 = vmatpush1.msra.mxu0 0.0
    %188 = vmatprep.mubr.f32.mxu0 0.0
    %189 = vmatmul.mubr.f32.gmra.mrb[0].mxu0 %v122
    %v190 = vpop.f32.mrb[0].mxu0
    %v191 = vadd.f32 %v118, %v190
    %v192 = vpop.f32.mrb[0].mxu0
    %193 = vdwg.mxu0
    %vm194 = vcmask 15360
    %195 = vst.msk [vmem:[#allocation2] sm:$0xff] %vm194, %v191
    // Predicated region
    $region22: #{pgnet_apply.1} parent=1 // pred_check
      _
    $region23: #{pgnet_apply.1} parent=1 // pred_check_branch
      %197 = sbr.rel (0) target = $region25
    $region24: #{pgnet_apply.1} parent=1 // pred_region
      %s199 = ssub.s32 128, 32
      %200 = vsyncadd [#allocation3], %s199
      %s201 = sshll.u32 [#allocation2], 4
      %s202 = int_to_ptr.vmem [resolvable:$true] %s201
      %207 = dma.vmem_to_hbm [thread:$0]  %s202, 32, %s5, [#allocation3], 32, 32, 2
    $region25: #{pgnet_apply.1} parent=1 // pred_fallthru
      _
    // Predicated region
    $region26: #{pgnet_apply.1} parent=1 // pred_check
      _
    $region27: #{pgnet_apply.1} parent=1 // pred_check_branch
      %209 = sbr.rel (0) target = $region29
    $region28: #{pgnet_apply.1} parent=1 // pred_region
      %210 = dma.done [#allocation3], 128
    $region29: #{pgnet_apply.1} parent=1 // pred_fallthru
      _
    %211 = vsyncpa [#allocation3], 1

</llo_original>
